<compile_context>
chip_gen: v5e
topology: v5e:2x2
jax: 0.10.0
libtpu: 0.0.40
codegen_flags: <defaults>
</compile_context>

<pallas_src>
import functools

import jax
import jax.numpy as jnp
from jax.experimental import pallas as pl
from jax.experimental.pallas import tpu as pltpu


def small_basic_block_kernel(x_ref, m_ref, w1_ref, b1_ref, w2f_ref, b2_ref,
                             w3f_ref, b3_ref, w4_ref, b4_ref, o_ref, *, W):
    _, Cin, HW = x_ref.shape

    x = x_ref[0]          # (Cin, HW)  channels on sublanes, spatial on lanes
    m = m_ref[...]        # (4, HW)    boundary validity masks (0.0 / 1.0)

    # --- Conv2d(ch_in, ch_out//4, kernel_size=1) + ReLU ---
    y1 = jnp.dot(w1_ref[...], x, preferred_element_type=jnp.float32) + b1_ref[...]
    y1 = jnp.maximum(y1, 0.0)                       # (Cmid, HW)

    # --- Conv2d(Cmid, Cmid, kernel_size=(3,1), padding=(1,0)) + ReLU ---
    # in[h-1, w] / in[h+1, w]  ==  flat shift by +-W; zero first / last row.
    prev_h = jnp.roll(y1, W, axis=1) * m[0:1, :]
    next_h = jnp.roll(y1, -W, axis=1) * m[1:2, :]
    stack_h = jnp.concatenate([prev_h, y1, next_h], axis=0)   # (3*Cmid, HW)
    y2 = jnp.dot(w2f_ref[...], stack_h,
                 preferred_element_type=jnp.float32) + b2_ref[...]
    y2 = jnp.maximum(y2, 0.0)

    # --- Conv2d(Cmid, Cmid, kernel_size=(1,3), padding=(0,1)) + ReLU ---
    # in[h, w-1] / in[h, w+1]  ==  flat shift by +-1; zero at row boundaries
    # (mask also kills the cross-row wrap of the flat shift).
    prev_w = jnp.roll(y2, 1, axis=1) * m[2:3, :]
    next_w = jnp.roll(y2, -1, axis=1) * m[3:4, :]
    stack_w = jnp.concatenate([prev_w, y2, next_w], axis=0)   # (3*Cmid, HW)
    y3 = jnp.dot(w3f_ref[...], stack_w,
                 preferred_element_type=jnp.float32) + b3_ref[...]
    y3 = jnp.maximum(y3, 0.0)

    # --- Conv2d(Cmid, ch_out, kernel_size=1) (no activation) ---
    o_ref[0] = jnp.dot(w4_ref[...], y3,
                       preferred_element_type=jnp.float32) + b4_ref[...]


def small_basic_block_forward(x_nchw, params):
    """x_nchw: (N, Cin, H, W) float32. Returns (N, Cout, H, W) float32."""
    w1, b1, w2, b2, w3, b3, w4, b4 = params
    N, Cin, H, W = x_nchw.shape
    Cmid = w1.shape[0]
    Cout = w4.shape[0]
    HW = H * W

    # Free (contiguous) reshape: spatial goes onto the lane axis.
    x2d = x_nchw.reshape(N, Cin, HW)

    # Fuse the 3 taps of each (3,1)/(1,3) conv into one contraction axis:
    #   w*f[o, k*Cmid + i] = w*[k, o, i]   (tap k multiplies in[.. + k - 1]).
    w2f = jnp.transpose(w2, (1, 0, 2)).reshape(Cmid, 3 * Cmid)
    w3f = jnp.transpose(w3, (1, 0, 2)).reshape(Cmid, 3 * Cmid)

    # Precomputed boundary masks (row-major flat index f = h*W + w):
    #   row 0: valid for in[h-1, w]   (f >= W)
    #   row 1: valid for in[h+1, w]   (f <  HW - W)
    #   row 2: valid for in[h, w-1]   (w != 0)
    #   row 3: valid for in[h, w+1]   (w != W - 1)
    f_idx = jnp.arange(HW, dtype=jnp.int32)
    col = f_idx % W
    masks = jnp.stack([
        f_idx >= W,
        f_idx < HW - W,
        col != 0,
        col != W - 1,
    ]).astype(jnp.float32)                       # (4, HW)

    kernel = functools.partial(small_basic_block_kernel, W=W)

    out = pl.pallas_call(
        kernel,
        out_shape=jax.ShapeDtypeStruct((N, Cout, HW), jnp.float32),
        grid=(N,),
        in_specs=[
            pl.BlockSpec((1, Cin, HW), lambda n: (n, 0, 0)),
            pl.BlockSpec((4, HW), lambda n: (0, 0)),
            pl.BlockSpec((Cmid, Cin), lambda n: (0, 0)),
            pl.BlockSpec((Cmid, 1), lambda n: (0, 0)),
            pl.BlockSpec((Cmid, 3 * Cmid), lambda n: (0, 0)),
            pl.BlockSpec((Cmid, 1), lambda n: (0, 0)),
            pl.BlockSpec((Cmid, 3 * Cmid), lambda n: (0, 0)),
            pl.BlockSpec((Cmid, 1), lambda n: (0, 0)),
            pl.BlockSpec((Cout, Cmid), lambda n: (0, 0)),
            pl.BlockSpec((Cout, 1), lambda n: (0, 0)),
        ],
        out_specs=pl.BlockSpec((1, Cout, HW), lambda n: (n, 0, 0)),
        compiler_params=pltpu.CompilerParams(
            dimension_semantics=("parallel",)),
    )(x2d, masks, w1, b1, w2f, b2, w3f, b3, w4, b4)

    return out.reshape(N, Cout, H, W)


def init_params(key, ch_in, ch_out):
    """Deterministic synthetic parameters.

    Layouts (relative to PyTorch OIHW):
      w1: (Cmid, Cin)        == torch W1[:, :, 0, 0]
      b*: (C, 1)
      w2: (3, Cmid, Cmid)    w2[k, o, i] == torch W2[o, i, k, 0]
      w3: (3, Cmid, Cmid)    w3[k, o, i] == torch W3[o, i, 0, k]
      w4: (Cout, Cmid)       == torch W4[:, :, 0, 0]
    """
    cmid = ch_out // 4
    keys = jax.random.split(key, 8)
    scale = 0.2
    w1 = scale * jax.random.normal(keys[0], (cmid, ch_in), jnp.float32)
    b1 = scale * jax.random.normal(keys[1], (cmid, 1), jnp.float32)
    w2 = scale * jax.random.normal(keys[2], (3, cmid, cmid), jnp.float32)
    b2 = scale * jax.random.normal(keys[3], (cmid, 1), jnp.float32)
    w3 = scale * jax.random.normal(keys[4], (3, cmid, cmid), jnp.float32)
    b3 = scale * jax.random.normal(keys[5], (cmid, 1), jnp.float32)
    w4 = scale * jax.random.normal(keys[6], (ch_out, cmid), jnp.float32)
    b4 = scale * jax.random.normal(keys[7], (ch_out, 1), jnp.float32)
    return (w1, b1, w2, b2, w3, b3, w4, b4)


def reference_forward(x_nchw, params):
    """Pure-JAX reference (lax.conv) matching PyTorch semantics."""
    w1, b1, w2, b2, w3, b3, w4, b4 = params
    x = jnp.transpose(x_nchw, (0, 2, 3, 1))  # NHWC
    dn = ("NHWC", "HWIO", "NHWC")

    def conv(x, w_hwio, b, padding):
        y = jax.lax.conv_general_dilated(x, w_hwio, (1, 1), padding,
                                         dimension_numbers=dn)
        return y + b.reshape(1, 1, 1, -1)

    y = jax.nn.relu(conv(x, jnp.transpose(w1)[None, None], b1,
                         [(0, 0), (0, 0)]))
    w2_hwio = jnp.transpose(w2, (0, 2, 1))[:, None]        # (3,1,Cmid,Cmid)
    y = jax.nn.relu(conv(y, w2_hwio, b2, [(1, 1), (0, 0)]))
    w3_hwio = jnp.transpose(w3, (0, 2, 1))[None]           # (1,3,Cmid,Cmid)
    y = jax.nn.relu(conv(y, w3_hwio, b3, [(0, 0), (1, 1)]))
    y = conv(y, jnp.transpose(w4)[None, None], b4, [(0, 0), (0, 0)])
    return jnp.transpose(y, (0, 3, 1, 2))


if __name__ == "__main__":
    key = jax.random.PRNGKey(0)
    k_x, k_p = jax.random.split(key)

    N, CH_IN, CH_OUT, H, W = 2, 4, 16, 16, 16
    x = jax.random.normal(k_x, (N, CH_IN, H, W), jnp.float32)
    params = init_params(k_p, CH_IN, CH_OUT)

    out = jax.block_until_ready(small_basic_block_forward(x, params))
    ref = jax.block_until_ready(reference_forward(x, params))

    assert out.shape == (N, CH_OUT, H, W), out.shape
    assert jnp.allclose(out, ref, atol=1e-4, rtol=1e-4), \
        float(jnp.max(jnp.abs(out - ref)))

    print("KERNEL_OK")
</pallas_src>

<mosaic_0001>
module attributes {stable_mosaic.version = 11 : i64} {
  func.func @small_basic_block_kernel(%arg0: i32, %arg1: memref<1x4x256xf32, #tpu.memory_space<vmem>>, %arg2: memref<4x256xf32, #tpu.memory_space<vmem>>, %arg3: memref<4x4xf32, #tpu.memory_space<vmem>>, %arg4: memref<4x1xf32, #tpu.memory_space<vmem>>, %arg5: memref<4x12xf32, #tpu.memory_space<vmem>>, %arg6: memref<4x1xf32, #tpu.memory_space<vmem>>, %arg7: memref<4x12xf32, #tpu.memory_space<vmem>>, %arg8: memref<4x1xf32, #tpu.memory_space<vmem>>, %arg9: memref<16x4xf32, #tpu.memory_space<vmem>>, %arg10: memref<16x1xf32, #tpu.memory_space<vmem>>, %arg11: memref<1x16x256xf32, #tpu.memory_space<vmem>>) attributes {dimension_semantics = [#tpu.dimension_semantics<parallel>], iteration_bounds = array<i64: 2>, scalar_prefetch = 0 : i64, scratch_operands = 0 : i64, tpu.core_type = #tpu.core_type<tc>, window_params = [{transform_indices = @transform_0, window_bounds = array<i64: 1, 4, 256>}, {pipeline_mode = #tpu.pipeline_mode<synchronous>, transform_indices = @transform_1, window_bounds = array<i64: 4, 256>}, {pipeline_mode = #tpu.pipeline_mode<synchronous>, transform_indices = @transform_2, window_bounds = array<i64: 4, 4>}, {pipeline_mode = #tpu.pipeline_mode<synchronous>, transform_indices = @transform_3, window_bounds = array<i64: 4, 1>}, {pipeline_mode = #tpu.pipeline_mode<synchronous>, transform_indices = @transform_4, window_bounds = array<i64: 4, 12>}, {pipeline_mode = #tpu.pipeline_mode<synchronous>, transform_indices = @transform_5, window_bounds = array<i64: 4, 1>}, {pipeline_mode = #tpu.pipeline_mode<synchronous>, transform_indices = @transform_6, window_bounds = array<i64: 4, 12>}, {pipeline_mode = #tpu.pipeline_mode<synchronous>, transform_indices = @transform_7, window_bounds = array<i64: 4, 1>}, {pipeline_mode = #tpu.pipeline_mode<synchronous>, transform_indices = @transform_8, window_bounds = array<i64: 16, 4>}, {pipeline_mode = #tpu.pipeline_mode<synchronous>, transform_indices = @transform_9, window_bounds = array<i64: 16, 1>}, {transform_indices = @transform_10, window_bounds = array<i64: 1, 16, 256>}]} {
    %c0 = arith.constant 0 : index
    %c0_0 = arith.constant 0 : index
    %c0_1 = arith.constant 0 : index
    %0 = vector.load %arg1[%c0, %c0_0, %c0_1] : memref<1x4x256xf32, #tpu.memory_space<vmem>>, vector<1x4x256xf32>
    %1 = vector.shape_cast %0 : vector<1x4x256xf32> to vector<4x256xf32>
    %c0_2 = arith.constant 0 : index
    %c0_3 = arith.constant 0 : index
    %2 = vector.load %arg2[%c0_2, %c0_3] : memref<4x256xf32, #tpu.memory_space<vmem>>, vector<4x256xf32>
    %c0_4 = arith.constant 0 : index
    %c0_5 = arith.constant 0 : index
    %3 = vector.load %arg3[%c0_4, %c0_5] : memref<4x4xf32, #tpu.memory_space<vmem>>, vector<4x4xf32>
    %cst = arith.constant dense<0.000000e+00> : vector<4x256xf32>
    %4 = tpu.matmul %3, %1, %cst {dimension_numbers = #tpu.dot_dimension_numbers<[1], [0], [0], [1], [0, 0, 1, 1], [], []>} : vector<4x4xf32>, vector<4x256xf32>, vector<4x256xf32> -> vector<4x256xf32>
    %c0_6 = arith.constant 0 : index
    %c0_7 = arith.constant 0 : index
    %5 = vector.load %arg4[%c0_6, %c0_7] : memref<4x1xf32, #tpu.memory_space<vmem>>, vector<4x1xf32>
    %6 = vector.broadcast %5 : vector<4x1xf32> to vector<4x256xf32>
    %7 = arith.addf %4, %6 : vector<4x256xf32>
    %cst_8 = arith.constant 0.000000e+00 : f32
    %8 = vector.broadcast %cst_8 : f32 to vector<4x256xf32>
    %9 = arith.maximumf %7, %8 : vector<4x256xf32>
    %10 = vector.extract_strided_slice %9 {offsets = [0, 240], sizes = [4, 16], strides = [1, 1]} : vector<4x256xf32> to vector<4x16xf32>
    %11 = vector.extract_strided_slice %9 {offsets = [0, 0], sizes = [4, 240], strides = [1, 1]} : vector<4x256xf32> to vector<4x240xf32>
    %12 = tpu.concatenate %10, %11 in 1 : vector<4x16xf32>, vector<4x240xf32> -> vector<4x256xf32>
    %13 = vector.extract_strided_slice %2 {offsets = [0, 0], sizes = [1, 256], strides = [1, 1]} : vector<4x256xf32> to vector<1x256xf32>
    %14 = vector.broadcast %13 : vector<1x256xf32> to vector<4x256xf32>
    %15 = arith.mulf %12, %14 : vector<4x256xf32>
    %16 = vector.extract_strided_slice %9 {offsets = [0, 16], sizes = [4, 240], strides = [1, 1]} : vector<4x256xf32> to vector<4x240xf32>
    %17 = vector.extract_strided_slice %9 {offsets = [0, 0], sizes = [4, 16], strides = [1, 1]} : vector<4x256xf32> to vector<4x16xf32>
    %18 = tpu.concatenate %16, %17 in 1 : vector<4x240xf32>, vector<4x16xf32> -> vector<4x256xf32>
    %19 = vector.extract_strided_slice %2 {offsets = [1, 0], sizes = [1, 256], strides = [1, 1]} : vector<4x256xf32> to vector<1x256xf32>
    %20 = vector.broadcast %19 : vector<1x256xf32> to vector<4x256xf32>
    %21 = arith.mulf %18, %20 : vector<4x256xf32>
    %22 = tpu.concatenate %15, %9, %21 in 0 : vector<4x256xf32>, vector<4x256xf32>, vector<4x256xf32> -> vector<12x256xf32>
    %c0_9 = arith.constant 0 : index
    %c0_10 = arith.constant 0 : index
    %23 = vector.load %arg5[%c0_9, %c0_10] : memref<4x12xf32, #tpu.memory_space<vmem>>, vector<4x12xf32>
    %cst_11 = arith.constant dense<0.000000e+00> : vector<4x256xf32>
    %24 = tpu.matmul %23, %22, %cst_11 {dimension_numbers = #tpu.dot_dimension_numbers<[1], [0], [0], [1], [0, 0, 1, 1], [], []>} : vector<4x12xf32>, vector<12x256xf32>, vector<4x256xf32> -> vector<4x256xf32>
    %c0_12 = arith.constant 0 : index
    %c0_13 = arith.constant 0 : index
    %25 = vector.load %arg6[%c0_12, %c0_13] : memref<4x1xf32, #tpu.memory_space<vmem>>, vector<4x1xf32>
    %26 = vector.broadcast %25 : vector<4x1xf32> to vector<4x256xf32>
    %27 = arith.addf %24, %26 : vector<4x256xf32>
    %cst_14 = arith.constant 0.000000e+00 : f32
    %28 = vector.broadcast %cst_14 : f32 to vector<4x256xf32>
    %29 = arith.maximumf %27, %28 : vector<4x256xf32>
    %30 = vector.extract_strided_slice %29 {offsets = [0, 255], sizes = [4, 1], strides = [1, 1]} : vector<4x256xf32> to vector<4x1xf32>
    %31 = vector.extract_strided_slice %29 {offsets = [0, 0], sizes = [4, 255], strides = [1, 1]} : vector<4x256xf32> to vector<4x255xf32>
    %32 = tpu.concatenate %30, %31 in 1 : vector<4x1xf32>, vector<4x255xf32> -> vector<4x256xf32>
    %33 = vector.extract_strided_slice %2 {offsets = [2, 0], sizes = [1, 256], strides = [1, 1]} : vector<4x256xf32> to vector<1x256xf32>
    %34 = vector.broadcast %33 : vector<1x256xf32> to vector<4x256xf32>
    %35 = arith.mulf %32, %34 : vector<4x256xf32>
    %36 = vector.extract_strided_slice %29 {offsets = [0, 1], sizes = [4, 255], strides = [1, 1]} : vector<4x256xf32> to vector<4x255xf32>
    %37 = vector.extract_strided_slice %29 {offsets = [0, 0], sizes = [4, 1], strides = [1, 1]} : vector<4x256xf32> to vector<4x1xf32>
    %38 = tpu.concatenate %36, %37 in 1 : vector<4x255xf32>, vector<4x1xf32> -> vector<4x256xf32>
    %39 = vector.extract_strided_slice %2 {offsets = [3, 0], sizes = [1, 256], strides = [1, 1]} : vector<4x256xf32> to vector<1x256xf32>
    %40 = vector.broadcast %39 : vector<1x256xf32> to vector<4x256xf32>
    %41 = arith.mulf %38, %40 : vector<4x256xf32>
    %42 = tpu.concatenate %35, %29, %41 in 0 : vector<4x256xf32>, vector<4x256xf32>, vector<4x256xf32> -> vector<12x256xf32>
    %c0_15 = arith.constant 0 : index
    %c0_16 = arith.constant 0 : index
    %43 = vector.load %arg7[%c0_15, %c0_16] : memref<4x12xf32, #tpu.memory_space<vmem>>, vector<4x12xf32>
    %cst_17 = arith.constant dense<0.000000e+00> : vector<4x256xf32>
    %44 = tpu.matmul %43, %42, %cst_17 {dimension_numbers = #tpu.dot_dimension_numbers<[1], [0], [0], [1], [0, 0, 1, 1], [], []>} : vector<4x12xf32>, vector<12x256xf32>, vector<4x256xf32> -> vector<4x256xf32>
    %c0_18 = arith.constant 0 : index
    %c0_19 = arith.constant 0 : index
    %45 = vector.load %arg8[%c0_18, %c0_19] : memref<4x1xf32, #tpu.memory_space<vmem>>, vector<4x1xf32>
    %46 = vector.broadcast %45 : vector<4x1xf32> to vector<4x256xf32>
    %47 = arith.addf %44, %46 : vector<4x256xf32>
    %cst_20 = arith.constant 0.000000e+00 : f32
    %48 = vector.broadcast %cst_20 : f32 to vector<4x256xf32>
    %49 = arith.maximumf %47, %48 : vector<4x256xf32>
    %c0_21 = arith.constant 0 : index
    %c0_22 = arith.constant 0 : index
    %50 = vector.load %arg9[%c0_21, %c0_22] : memref<16x4xf32, #tpu.memory_space<vmem>>, vector<16x4xf32>
    %cst_23 = arith.constant dense<0.000000e+00> : vector<16x256xf32>
    %51 = tpu.matmul %50, %49, %cst_23 {dimension_numbers = #tpu.dot_dimension_numbers<[1], [0], [0], [1], [0, 0, 1, 1], [], []>} : vector<16x4xf32>, vector<4x256xf32>, vector<16x256xf32> -> vector<16x256xf32>
    %c0_24 = arith.constant 0 : index
    %c0_25 = arith.constant 0 : index
    %52 = vector.load %arg10[%c0_24, %c0_25] : memref<16x1xf32, #tpu.memory_space<vmem>>, vector<16x1xf32>
    %53 = vector.broadcast %52 : vector<16x1xf32> to vector<16x256xf32>
    %54 = arith.addf %51, %53 : vector<16x256xf32>
    %c0_26 = arith.constant 0 : index
    %c0_27 = arith.constant 0 : index
    %c0_28 = arith.constant 0 : index
    %55 = vector.load %arg11[%c0_26, %c0_27, %c0_28] : memref<1x16x256xf32, #tpu.memory_space<vmem>>, vector<1x16x256xf32>
    %56 = vector.shape_cast %55 : vector<1x16x256xf32> to vector<16x256xf32>
    %57 = vector.shape_cast %54 : vector<16x256xf32> to vector<1x16x256xf32>
    tpu.vector_store %arg11[%c0_26, %c0_27, %c0_28], %57 {strides = array<i32>} : memref<1x16x256xf32, #tpu.memory_space<vmem>>, vector<1x16x256xf32>,
    return
  }
  func.func @transform_0(%arg0: i32) -> (i32, i32, i32) {
    %c0_i32 = arith.constant 0 : i32
    %c0_i32_0 = arith.constant 0 : i32
    %c0_i32_1 = arith.constant 0 : i32
    return %arg0, %c0_i32, %c0_i32_0 : i32, i32, i32
  }
  func.func @transform_1(%arg0: i32) -> (i32, i32) {
    %c0_i32 = arith.constant 0 : i32
    %c0_i32_0 = arith.constant 0 : i32
    %c0_i32_1 = arith.constant 0 : i32
    return %c0_i32, %c0_i32_0 : i32, i32
  }
  func.func @transform_2(%arg0: i32) -> (i32, i32) {
    %c0_i32 = arith.constant 0 : i32
    %c0_i32_0 = arith.constant 0 : i32
    %c0_i32_1 = arith.constant 0 : i32
    return %c0_i32, %c0_i32_0 : i32, i32
  }
  func.func @transform_3(%arg0: i32) -> (i32, i32) {
    %c0_i32 = arith.constant 0 : i32
    %c0_i32_0 = arith.constant 0 : i32
    %c0_i32_1 = arith.constant 0 : i32
    return %c0_i32, %c0_i32_0 : i32, i32
  }
  func.func @transform_4(%arg0: i32) -> (i32, i32) {
    %c0_i32 = arith.constant 0 : i32
    %c0_i32_0 = arith.constant 0 : i32
    %c0_i32_1 = arith.constant 0 : i32
    return %c0_i32, %c0_i32_0 : i32, i32
  }
  func.func @transform_5(%arg0: i32) -> (i32, i32) {
    %c0_i32 = arith.constant 0 : i32
    %c0_i32_0 = arith.constant 0 : i32
    %c0_i32_1 = arith.constant 0 : i32
    return %c0_i32, %c0_i32_0 : i32, i32
  }
  func.func @transform_6(%arg0: i32) -> (i32, i32) {
    %c0_i32 = arith.constant 0 : i32
    %c0_i32_0 = arith.constant 0 : i32
    %c0_i32_1 = arith.constant 0 : i32
    return %c0_i32, %c0_i32_0 : i32, i32
  }
  func.func @transform_7(%arg0: i32) -> (i32, i32) {
    %c0_i32 = arith.constant 0 : i32
    %c0_i32_0 = arith.constant 0 : i32
    %c0_i32_1 = arith.constant 0 : i32
    return %c0_i32, %c0_i32_0 : i32, i32
  }
  func.func @transform_8(%arg0: i32) -> (i32, i32) {
    %c0_i32 = arith.constant 0 : i32
    %c0_i32_0 = arith.constant 0 : i32
    %c0_i32_1 = arith.constant 0 : i32
    return %c0_i32, %c0_i32_0 : i32, i32
  }
  func.func @transform_9(%arg0: i32) -> (i32, i32) {
    %c0_i32 = arith.constant 0 : i32
    %c0_i32_0 = arith.constant 0 : i32
    %c0_i32_1 = arith.constant 0 : i32
    return %c0_i32, %c0_i32_0 : i32, i32
  }
  func.func @transform_10(%arg0: i32) -> (i32, i32, i32) {
    %c0_i32 = arith.constant 0 : i32
    %c0_i32_0 = arith.constant 0 : i32
    %c0_i32_1 = arith.constant 0 : i32
    return %arg0, %c0_i32, %c0_i32_0 : i32, i32, i32
  }
}

</mosaic_0001>

<llo_original>
// kernel: tpu_custom_call.1
$region0: #{tpu_custom_call.1}
  #allocation0 [shape = 'u32[]', space=smem, size = 0x4, offset = 0x4, fixed_abs, tag = 'smem constant byte address 0x4 - core index']
  #allocation1 [shape = 'u32[72,128]{1,0:T(1,128)}', space=vmem, size = 0x9000, scoped, tag = 'internal scratch']
  %s0 = inlined_call_operand.vmem [shape: f32[2,4,256], index: 0, kind: input, shape index: {}]
  %s1 = inlined_call_operand.vmem [shape: f32[4,256], index: 1, kind: input, shape index: {}]
  %s2 = inlined_call_operand.vmem [shape: f32[4,4], index: 2, kind: input, shape index: {}]
  %s3 = inlined_call_operand.vmem [shape: f32[4,1], index: 3, kind: input, shape index: {}]
  %s4 = inlined_call_operand.vmem [shape: f32[4,12], index: 4, kind: input, shape index: {}]
  %s5 = inlined_call_operand.vmem [shape: f32[4,1], index: 5, kind: input, shape index: {}]
  %s6 = inlined_call_operand.vmem [shape: f32[4,12], index: 6, kind: input, shape index: {}]
  %s7 = inlined_call_operand.vmem [shape: f32[4,1], index: 7, kind: input, shape index: {}]
  %s8 = inlined_call_operand.vmem [shape: f32[16,4], index: 8, kind: input, shape index: {}]
  %s9 = inlined_call_operand.vmem [shape: f32[16,1], index: 9, kind: input, shape index: {}]
  %s10 = inlined_call_operand.hbm [shape: f32[2,16,256], index: 10, kind: output, shape index: {}]
  %s11 = sld [smem:[#allocation0]]
  $region73: #{tpu_custom_call.1} parent=0
    _
  %s13 = ssub.s32 1, %s11
  %s14 = scalar_select 0, %s13, %s11
  $region1: #{tpu_custom_call.1} parent=0
    #allocation2 [shape = 'u8[32768]{0}', space=vmem, size = 0x8000, scoped, tag = 'output window, operand 0']
    #allocation3 [shape = 's32[2]{0}', space=sflag, size = 0x8, scoped, tag = 'scoped memory for tpu_custom_call.1']
    %15 = vsyncpa [#allocation3], 0
    %s16 = scalar_lea.sflag [#allocation3], 1
    %17 = vsyncpa %s16, 0
    loop: start=0, step=1, limit=4
    $region2: #{tpu_custom_call.1} parent=1 // loop_pre_header
      _
    $region3: #{tpu_custom_call.1} parent=1 // loop_header
      %s19 = sphi 0, %s23
      %p20 = scmp.ge.s32.totalorder %s19, 4
      %s29 = sphi 0, %s31
      %s32 = sphi 0, %s29
      %s33 = sphi 0, %s32
      %s49 = sphi 0, %s33
      %s53 = sphi 0, %s53
      %s55 = sphi 0, %s53
      %s56 = sphi 0, %s55
      %s70 = sphi 0, %s56
      %s74 = sphi 0, %s74
      %s76 = sphi 0, %s74
      %s77 = sphi 0, %s76
      %s91 = sphi 0, %s77
      %s95 = sphi 0, %s95
      %s97 = sphi 0, %s95
      %s98 = sphi 0, %s97
      %s112 = sphi 0, %s98
      %s116 = sphi 0, %s116
      %s118 = sphi 0, %s116
      %s119 = sphi 0, %s118
      %s133 = sphi 0, %s119
      %s137 = sphi 0, %s137
      %s139 = sphi 0, %s137
      %s140 = sphi 0, %s139
      %s154 = sphi 0, %s140
      %s158 = sphi 0, %s158
      %s160 = sphi 0, %s158
      %s161 = sphi 0, %s160
      %s175 = sphi 0, %s161
      %s179 = sphi 0, %s179
      %s181 = sphi 0, %s179
      %s182 = sphi 0, %s181
      %s196 = sphi 0, %s182
      %s200 = sphi 0, %s200
      %s202 = sphi 0, %s200
      %s203 = sphi 0, %s202
      %s217 = sphi 0, %s203
      %s221 = sphi 0, %s221
      %s223 = sphi 0, %s221
      %s224 = sphi 0, %s223
      %s238 = sphi 0, %s224
      %s244 = sphi 0, %s246
      %s247 = sphi 0, %s244
      %s248 = sphi 0, %s247
      %s264 = sphi 0, %s248
    $region4: #{tpu_custom_call.1} parent=1 // loop_header_branch
      %22 = sbr.rel (%p20) target = $region8
    $region5: #{tpu_custom_call.1} parent=1 // loop_body
      %s24 = ssub.s32 %s19, 1
      %s25 = ssub.s32 %s19, 2
      %s26 = sadd.s32 %s19, 1
      %s27 = ssub.s32 %s19, %s26
      %p28 = scmp.eq.s32.totalorder %s27, 0
      %s30 = sadd.s32 %s29, 1
      %s31 = scalar_select %p28, %s29, %s30
      %p34 = pneg %p28
      %p35 = scmp.eq.s32.totalorder %s19, 1
      %p36 = por %p34, %p35
      %p37 = scmp.ne.s32.totalorder %s29, %s32
      %p38 = scmp.eq.s32.totalorder %s19, 0
      %p39 = por %p37, %p38
      %p40 = scmp.ne.s32.totalorder %s29, %s32
      %p41 = scmp.eq.s32.totalorder %s24, 1
      %p42 = por %p40, %p41
      %p43 = scmp.ne.s32.totalorder %s32, %s33
      %p44 = scmp.eq.s32.totalorder %s24, 0
      %p45 = por %p43, %p44
      %p46 = scmp.ne.s32.totalorder %s32, %s33
      %p47 = scmp.eq.s32.totalorder %s25, 1
      %p48 = por %p46, %p47
      %p50 = scmp.ne.s32.totalorder %s33, %s49
      %p51 = scmp.eq.s32.totalorder %s25, 0
      %p52 = por %p50, %p51
      %s54 = sadd.s32 %s53, 1
      %p57 = scmp.eq.s32.totalorder %s19, 1
      %p58 = scmp.ne.s32.totalorder %s53, %s55
      %p59 = scmp.eq.s32.totalorder %s19, 0
      %p60 = por %p58, %p59
      %p61 = scmp.ne.s32.totalorder %s53, %s55
      %p62 = scmp.eq.s32.totalorder %s24, 1
      %p63 = por %p61, %p62
      %p64 = scmp.ne.s32.totalorder %s55, %s56
      %p65 = scmp.eq.s32.totalorder %s24, 0
      %p66 = por %p64, %p65
      %p67 = scmp.ne.s32.totalorder %s55, %s56
      %p68 = scmp.eq.s32.totalorder %s25, 1
      %p69 = por %p67, %p68
      %p71 = scmp.ne.s32.totalorder %s56, %s70
      %p72 = scmp.eq.s32.totalorder %s25, 0
      %p73 = por %p71, %p72
      %s75 = sadd.s32 %s74, 1
      %p78 = scmp.eq.s32.totalorder %s19, 1
      %p79 = scmp.ne.s32.totalorder %s74, %s76
      %p80 = scmp.eq.s32.totalorder %s19, 0
      %p81 = por %p79, %p80
      %p82 = scmp.ne.s32.totalorder %s74, %s76
      %p83 = scmp.eq.s32.totalorder %s24, 1
      %p84 = por %p82, %p83
      %p85 = scmp.ne.s32.totalorder %s76, %s77
      %p86 = scmp.eq.s32.totalorder %s24, 0
      %p87 = por %p85, %p86
      %p88 = scmp.ne.s32.totalorder %s76, %s77
      %p89 = scmp.eq.s32.totalorder %s25, 1
      %p90 = por %p88, %p89
      %p92 = scmp.ne.s32.totalorder %s77, %s91
      %p93 = scmp.eq.s32.totalorder %s25, 0
      %p94 = por %p92, %p93
      %s96 = sadd.s32 %s95, 1
      %p99 = scmp.eq.s32.totalorder %s19, 1
      %p100 = scmp.ne.s32.totalorder %s95, %s97
      %p101 = scmp.eq.s32.totalorder %s19, 0
      %p102 = por %p100, %p101
      %p103 = scmp.ne.s32.totalorder %s95, %s97
      %p104 = scmp.eq.s32.totalorder %s24, 1
      %p105 = por %p103, %p104
      %p106 = scmp.ne.s32.totalorder %s97, %s98
      %p107 = scmp.eq.s32.totalorder %s24, 0
      %p108 = por %p106, %p107
      %p109 = scmp.ne.s32.totalorder %s97, %s98
      %p110 = scmp.eq.s32.totalorder %s25, 1
      %p111 = por %p109, %p110
      %p113 = scmp.ne.s32.totalorder %s98, %s112
      %p114 = scmp.eq.s32.totalorder %s25, 0
      %p115 = por %p113, %p114
      %s117 = sadd.s32 %s116, 1
      %p120 = scmp.eq.s32.totalorder %s19, 1
      %p121 = scmp.ne.s32.totalorder %s116, %s118
      %p122 = scmp.eq.s32.totalorder %s19, 0
      %p123 = por %p121, %p122
      %p124 = scmp.ne.s32.totalorder %s116, %s118
      %p125 = scmp.eq.s32.totalorder %s24, 1
      %p126 = por %p124, %p125
      %p127 = scmp.ne.s32.totalorder %s118, %s119
      %p128 = scmp.eq.s32.totalorder %s24, 0
      %p129 = por %p127, %p128
      %p130 = scmp.ne.s32.totalorder %s118, %s119
      %p131 = scmp.eq.s32.totalorder %s25, 1
      %p132 = por %p130, %p131
      %p134 = scmp.ne.s32.totalorder %s119, %s133
      %p135 = scmp.eq.s32.totalorder %s25, 0
      %p136 = por %p134, %p135
      %s138 = sadd.s32 %s137, 1
      %p141 = scmp.eq.s32.totalorder %s19, 1
      %p142 = scmp.ne.s32.totalorder %s137, %s139
      %p143 = scmp.eq.s32.totalorder %s19, 0
      %p144 = por %p142, %p143
      %p145 = scmp.ne.s32.totalorder %s137, %s139
      %p146 = scmp.eq.s32.totalorder %s24, 1
      %p147 = por %p145, %p146
      %p148 = scmp.ne.s32.totalorder %s139, %s140
      %p149 = scmp.eq.s32.totalorder %s24, 0
      %p150 = por %p148, %p149
      %p151 = scmp.ne.s32.totalorder %s139, %s140
      %p152 = scmp.eq.s32.totalorder %s25, 1
      %p153 = por %p151, %p152
      %p155 = scmp.ne.s32.totalorder %s140, %s154
      %p156 = scmp.eq.s32.totalorder %s25, 0
      %p157 = por %p155, %p156
      %s159 = sadd.s32 %s158, 1
      %p162 = scmp.eq.s32.totalorder %s19, 1
      %p163 = scmp.ne.s32.totalorder %s158, %s160
      %p164 = scmp.eq.s32.totalorder %s19, 0
      %p165 = por %p163, %p164
      %p166 = scmp.ne.s32.totalorder %s158, %s160
      %p167 = scmp.eq.s32.totalorder %s24, 1
      %p168 = por %p166, %p167
      %p169 = scmp.ne.s32.totalorder %s160, %s161
      %p170 = scmp.eq.s32.totalorder %s24, 0
      %p171 = por %p169, %p170
      %p172 = scmp.ne.s32.totalorder %s160, %s161
      %p173 = scmp.eq.s32.totalorder %s25, 1
      %p174 = por %p172, %p173
      %p176 = scmp.ne.s32.totalorder %s161, %s175
      %p177 = scmp.eq.s32.totalorder %s25, 0
      %p178 = por %p176, %p177
      %s180 = sadd.s32 %s179, 1
      %p183 = scmp.eq.s32.totalorder %s19, 1
      %p184 = scmp.ne.s32.totalorder %s179, %s181
      %p185 = scmp.eq.s32.totalorder %s19, 0
      %p186 = por %p184, %p185
      %p187 = scmp.ne.s32.totalorder %s179, %s181
      %p188 = scmp.eq.s32.totalorder %s24, 1
      %p189 = por %p187, %p188
      %p190 = scmp.ne.s32.totalorder %s181, %s182
      %p191 = scmp.eq.s32.totalorder %s24, 0
      %p192 = por %p190, %p191
      %p193 = scmp.ne.s32.totalorder %s181, %s182
      %p194 = scmp.eq.s32.totalorder %s25, 1
      %p195 = por %p193, %p194
      %p197 = scmp.ne.s32.totalorder %s182, %s196
      %p198 = scmp.eq.s32.totalorder %s25, 0
      %p199 = por %p197, %p198
      %s201 = sadd.s32 %s200, 1
      %p204 = scmp.eq.s32.totalorder %s19, 1
      %p205 = scmp.ne.s32.totalorder %s200, %s202
      %p206 = scmp.eq.s32.totalorder %s19, 0
      %p207 = por %p205, %p206
      %p208 = scmp.ne.s32.totalorder %s200, %s202
      %p209 = scmp.eq.s32.totalorder %s24, 1
      %p210 = por %p208, %p209
      %p211 = scmp.ne.s32.totalorder %s202, %s203
      %p212 = scmp.eq.s32.totalorder %s24, 0
      %p213 = por %p211, %p212
      %p214 = scmp.ne.s32.totalorder %s202, %s203
      %p215 = scmp.eq.s32.totalorder %s25, 1
      %p216 = por %p214, %p215
      %p218 = scmp.ne.s32.totalorder %s203, %s217
      %p219 = scmp.eq.s32.totalorder %s25, 0
      %p220 = por %p218, %p219
      %s222 = sadd.s32 %s221, 1
      %p225 = scmp.eq.s32.totalorder %s19, 1
      %p226 = scmp.ne.s32.totalorder %s221, %s223
      %p227 = scmp.eq.s32.totalorder %s19, 0
      %p228 = por %p226, %p227
      %p229 = scmp.ne.s32.totalorder %s221, %s223
      %p230 = scmp.eq.s32.totalorder %s24, 1
      %p231 = por %p229, %p230
      %p232 = scmp.ne.s32.totalorder %s223, %s224
      %p233 = scmp.eq.s32.totalorder %s24, 0
      %p234 = por %p232, %p233
      %p235 = scmp.ne.s32.totalorder %s223, %s224
      %p236 = scmp.eq.s32.totalorder %s25, 1
      %p237 = por %p235, %p236
      %p239 = scmp.ne.s32.totalorder %s224, %s238
      %p240 = scmp.eq.s32.totalorder %s25, 0
      %p241 = por %p239, %p240
      %s242 = ssub.s32 %s19, %s26
      %p243 = scmp.eq.s32.totalorder %s242, 0
      %s245 = sadd.s32 %s244, 1
      %s246 = scalar_select %p243, %s244, %s245
      %p249 = pneg %p243
      %p250 = scmp.eq.s32.totalorder %s19, 1
      %p251 = por %p249, %p250
      %p252 = scmp.ne.s32.totalorder %s244, %s247
      %p253 = scmp.eq.s32.totalorder %s19, 0
      %p254 = por %p252, %p253
      %p255 = scmp.ne.s32.totalorder %s244, %s247
      %p256 = scmp.eq.s32.totalorder %s24, 1
      %p257 = por %p255, %p256
      %p258 = scmp.ne.s32.totalorder %s247, %s248
      %p259 = scmp.eq.s32.totalorder %s24, 0
      %p260 = por %p258, %p259
      %p261 = scmp.ne.s32.totalorder %s247, %s248
      %p262 = scmp.eq.s32.totalorder %s25, 1
      %p263 = por %p261, %p262
      %p265 = scmp.ne.s32.totalorder %s248, %s264
      %p266 = scmp.eq.s32.totalorder %s25, 0
      %p267 = por %p265, %p266
      %p268 = scmp.le.s32.totalorder 1, %s19
      %p269 = scmp.lt.s32.totalorder %s19, 3
      %p270 = pnand %p268, %p269
      %p271 = pneg %p270
      // Predicated region
      $region9: #{tpu_custom_call.1} parent=5 // pred_check
        _
      $region10: #{tpu_custom_call.1} parent=5 // pred_check_branch
        %273 = sbr.rel (%p270) target = $region12
      $region11: #{tpu_custom_call.1} parent=5 // pred_region
        %s274 = ssub.s32 %s19, 1
        // Predicated region
        $region13: #{tpu_custom_call.1} parent=11 // pred_check
          %p275 = pneg %p66
        $region14: #{tpu_custom_call.1} parent=11 // pred_check_branch
          %277 = sbr.rel (%p275) target = $region16
        $region15: #{tpu_custom_call.1} parent=11 // pred_region
          _
        $region16: #{tpu_custom_call.1} parent=11 // pred_fallthru
          _
        // Predicated region
        $region17: #{tpu_custom_call.1} parent=11 // pred_check
          %p278 = pneg %p87
        $region18: #{tpu_custom_call.1} parent=11 // pred_check_branch
          %280 = sbr.rel (%p278) target = $region20
        $region19: #{tpu_custom_call.1} parent=11 // pred_region
          _
        $region20: #{tpu_custom_call.1} parent=11 // pred_fallthru
          _
        // Predicated region
        $region21: #{tpu_custom_call.1} parent=11 // pred_check
          %p281 = pneg %p108
        $region22: #{tpu_custom_call.1} parent=11 // pred_check_branch
          %283 = sbr.rel (%p281) target = $region24
        $region23: #{tpu_custom_call.1} parent=11 // pred_region
          _
        $region24: #{tpu_custom_call.1} parent=11 // pred_fallthru
          _
        // Predicated region
        $region25: #{tpu_custom_call.1} parent=11 // pred_check
          %p284 = pneg %p129
        $region26: #{tpu_custom_call.1} parent=11 // pred_check_branch
          %286 = sbr.rel (%p284) target = $region28
        $region27: #{tpu_custom_call.1} parent=11 // pred_region
          _
        $region28: #{tpu_custom_call.1} parent=11 // pred_fallthru
          _
        // Predicated region
        $region29: #{tpu_custom_call.1} parent=11 // pred_check
          %p287 = pneg %p150
        $region30: #{tpu_custom_call.1} parent=11 // pred_check_branch
          %289 = sbr.rel (%p287) target = $region32
        $region31: #{tpu_custom_call.1} parent=11 // pred_region
          _
        $region32: #{tpu_custom_call.1} parent=11 // pred_fallthru
          _
        // Predicated region
        $region33: #{tpu_custom_call.1} parent=11 // pred_check
          %p290 = pneg %p171
        $region34: #{tpu_custom_call.1} parent=11 // pred_check_branch
          %292 = sbr.rel (%p290) target = $region36
        $region35: #{tpu_custom_call.1} parent=11 // pred_region
          _
        $region36: #{tpu_custom_call.1} parent=11 // pred_fallthru
          _
        // Predicated region
        $region37: #{tpu_custom_call.1} parent=11 // pred_check
          %p293 = pneg %p192
        $region38: #{tpu_custom_call.1} parent=11 // pred_check_branch
          %295 = sbr.rel (%p293) target = $region40
        $region39: #{tpu_custom_call.1} parent=11 // pred_region
          _
        $region40: #{tpu_custom_call.1} parent=11 // pred_fallthru
          _
        // Predicated region
        $region41: #{tpu_custom_call.1} parent=11 // pred_check
          %p296 = pneg %p213
        $region42: #{tpu_custom_call.1} parent=11 // pred_check_branch
          %298 = sbr.rel (%p296) target = $region44
        $region43: #{tpu_custom_call.1} parent=11 // pred_region
          _
        $region44: #{tpu_custom_call.1} parent=11 // pred_fallthru
          _
        // Predicated region
        $region45: #{tpu_custom_call.1} parent=11 // pred_check
          %p299 = pneg %p234
        $region46: #{tpu_custom_call.1} parent=11 // pred_check_branch
          %301 = sbr.rel (%p299) target = $region48
        $region47: #{tpu_custom_call.1} parent=11 // pred_region
          _
        $region48: #{tpu_custom_call.1} parent=11 // pred_fallthru
          _
      $region12: #{tpu_custom_call.1} parent=5 // pred_fallthru
        _
      %p302 = scmp.lt.s32.totalorder %s19, 2
      // Predicated region
      $region49: #{tpu_custom_call.1} parent=5 // pred_check
        %p303 = pneg %p302
      $region50: #{tpu_custom_call.1} parent=5 // pred_check_branch
        %305 = sbr.rel (%p303) target = $region52
      $region51: #{tpu_custom_call.1} parent=5 // pred_region
        // Predicated region
        $region53: #{tpu_custom_call.1} parent=51 // pred_check
          %p306 = pneg %p39
        $region54: #{tpu_custom_call.1} parent=51 // pred_check_branch
          %308 = sbr.rel (%p306) target = $region56
        $region55: #{tpu_custom_call.1} parent=51 // pred_region
          %p309 = scmp.lt.s32.totalorder %s19, 1
          %s310 = scalar_select %p309, %s19, 1
          %s311 = smul.addr %s310, 2
          %s312 = smul.addr %s311, 4
          %s313 = scalar_lea.vmem %s0, %s312
        $region56: #{tpu_custom_call.1} parent=51 // pred_fallthru
          _
      $region52: #{tpu_custom_call.1} parent=5 // pred_fallthru
        _
      %p314 = scmp.le.s32.totalorder 1, %s19
      %p315 = scmp.lt.s32.totalorder %s19, 3
      %p316 = pnand %p314, %p315
      %p317 = pneg %p316
      // Predicated region
      $region57: #{tpu_custom_call.1} parent=5 // pred_check
        _
      $region58: #{tpu_custom_call.1} parent=5 // pred_check_branch
        %319 = sbr.rel (%p316) target = $region60
      $region59: #{tpu_custom_call.1} parent=5 // pred_region
        %s320 = ssub.s32 %s19, 1
        %p321 = scmp.lt.s32.totalorder %s24, 1
        %s322 = scalar_select %p321, %s24, 1
        %s323 = smul.addr %s322, 2
        %s324 = smul.addr %s323, 4
        %s325 = scalar_lea.vmem %s0, %s324
        %p326 = pneg %p45
        %p327 = pneg %p42
        %p328 = pneg %p66
        %p329 = pneg %p63
        %p330 = pneg %p87
        %p331 = pneg %p84
        %p332 = pneg %p108
        %p333 = pneg %p105
        %p334 = pneg %p129
        %p335 = pneg %p126
        %p336 = pneg %p150
        %p337 = pneg %p147
        %p338 = pneg %p171
        %p339 = pneg %p168
        %p340 = pneg %p192
        %p341 = pneg %p189
        %p342 = pneg %p213
        %p343 = pneg %p210
        %p344 = pneg %p234
        %p345 = pneg %p231
        %p346 = pneg %p260
        %p347 = pneg %p257
        %s348 = sand.u32 %s247, 1
        %s349 = scalar_lea.sflag [#allocation3], %s348
        %s350 = sand.u32 %s247, 1
        %s351 = smul.addr %s350, 32
        %s352 = scalar_lea.vmem [#allocation2], %s351
        %p353 = scmp.lt.s32.totalorder %s24, 1
        %s354 = scalar_select %p353, %s24, 1
        %s355 = smul.addr %s354, 2
        %s356 = smul.addr %s355, 4
        %s357 = scalar_lea.vmem %s0, %s356
        %v358 = vld [vmem:[%s357] sm:$0xff]
        %v359 = vld [vmem:[%s1] sm:$0xff]
        %v360 = vld [vmem:[%s2] sm:$0xf]
        %v361 = vld [vmem:[%s3] sm:$0xf]
        %363 = vset.pattern.permute.xlu0 0
        %364 = vperm.xlu0 %363, %v361
        %v365 = vpop.permute.xlu0 %364
        %368 = vst [vmem:[#allocation1] ss:$2 sm:$0xff] %v358
        %v369 = vld.sshfl [vmem:[#allocation1] sm:$0xff pattern:$0x75316420]
        %v370 = vld.sshfl [vmem:[#allocation1 + $0x8] sm:$0xff pattern:$0x75316420]
        %vm371 = vcmask 31744
        %v373 = vsel %vm371, %v360, 0
        %vm375 = vcmask 1043456
        %v376 = vsel %vm375, %v369, 0
        %v378 = vsel %vm375, %v370, 0
        %380 = vmatpush.msra.mxu0 0.0
        %381 = vmatpush.msra.mxu0 0.0
        %382 = vmatpush.msra.mxu0 0.0
        %383 = vmatpush.msra.mxu0 0.0
        %384 = vmatpush.msra.mxu0 0.0
        %385 = vmatpush.msra.mxu0 0.0
        %386 = vmatpush.msra.mxu0 0.0
        %387 = vmatpush.msra.mxu0 0.0
        %388 = vmatpush.msra.mxu0 0.0
        %389 = vmatpush.msra.mxu0 0.0
        %390 = vmatpush.msra.mxu0 0.0
        %391 = vmatpush.msra.mxu0 0.0
        %392 = vmatpush.msra.mxu0 0.0
        %393 = vmatpush.msra.mxu0 0.0
        %394 = vmatpush.msra.mxu0 0.0
        %395 = vmatpush.msra.mxu0 %v376
        %396 = vmatmul.f32.gmra.mxu0 %v373
        %v397 = vpop.f32.mrf.mxu0
        %v398 = vadd.f32 %v365, %v397
        %399 = vdwg.mxu0
        %400 = vmatpush.msra.mxu0 0.0
        %401 = vmatpush.msra.mxu0 0.0
        %402 = vmatpush.msra.mxu0 0.0
        %403 = vmatpush.msra.mxu0 0.0
        %404 = vmatpush.msra.mxu0 0.0
        %405 = vmatpush.msra.mxu0 0.0
        %406 = vmatpush.msra.mxu0 0.0
        %407 = vmatpush.msra.mxu0 0.0
        %408 = vmatpush.msra.mxu0 0.0
        %409 = vmatpush.msra.mxu0 0.0
        %410 = vmatpush.msra.mxu0 0.0
        %411 = vmatpush.msra.mxu0 0.0
        %412 = vmatpush.msra.mxu0 0.0
        %413 = vmatpush.msra.mxu0 0.0
        %414 = vmatpush.msra.mxu0 0.0
        %415 = vmatpush.msra.mxu0 %v378
        %416 = vmatmul.f32.gmra.mxu0 %v373
        %v417 = vpop.f32.mrf.mxu0
        %v418 = vadd.f32 %v365, %v417
        %419 = vdwg.mxu0
        %v420 = vmax.f32 %v398, 0.0
        %v421 = vmax.f32 %v418, 0.0
        %423 = vrot.lane.b32.xlu0 %v421, 16
        %v424 = vpop.permute.xlu0 %423
        %427 = vrot.lane.b32.xlu0 %v420, 16
        %v428 = vpop.permute.xlu0 %427
        %vm429 = vcmask 130048
        %v430 = vsel %vm429, %v428, %v424
        %v433 = vsel %vm429, %v424, %v428
        %v435 = vperm.slane %v359, 0
        %v436 = vperm.slane %v359, 4
        %v439 = vperm.slane %v435, 0
        %v440 = vperm.slane %v436, 0
        %v441 = vmul.f32 %v433, %v439
        %v442 = vmul.f32 %v430, %v440
        %443 = vrot.lane.b32.xlu0 %v420, 112
        %v444 = vpop.permute.xlu0 %443
        %445 = vrot.lane.b32.xlu0 %v421, 112
        %v446 = vpop.permute.xlu0 %445
        %vm447 = vcmask 916480
        %v448 = vsel %vm447, %v444, %v446
        %v452 = vsel %vm447, %v446, %v444
        %v453 = vperm.slane %v359, 1
        %v454 = vperm.slane %v359, 5
        %v457 = vperm.slane %v453, 1
        %v458 = vperm.slane %v454, 1
        %v459 = vmul.f32 %v448, %v457
        %v460 = vmul.f32 %v452, %v458
        %v461 = vrot.slane %v420, 4
        %v462 = vrot.slane %v421, 4
        %v465 = vsel %vm375, %v441, %v461
        %v466 = vsel %vm375, %v442, %v462
        %v467 = vld [vmem:[%s4] sm:$0xf]
        %v468 = vld [vmem:[%s5] sm:$0xf]
        %470 = vset.pattern.permute.xlu0 0
        %471 = vperm.xlu0 %470, %v468
        %v472 = vpop.permute.xlu0 %471
        %vm474 = vcmask 97280
        %v476 = vsel %vm474, %v467, 0
        %v479 = vsel %vm375, %v459, 0
        %v482 = vsel %vm375, %v460, 0
        %484 = vmatpush.msra.mxu0 0.0
        %485 = vmatpush.msra.mxu0 0.0
        %486 = vmatpush.msra.mxu0 0.0
        %487 = vmatpush.msra.mxu0 0.0
        %488 = vmatpush.msra.mxu0 0.0
        %489 = vmatpush.msra.mxu0 0.0
        %490 = vmatpush.msra.mxu0 0.0
        %491 = vmatpush.msra.mxu0 0.0
        %492 = vmatpush.msra.mxu0 0.0
        %493 = vmatpush.msra.mxu0 0.0
        %494 = vmatpush.msra.mxu0 0.0
        %495 = vmatpush.msra.mxu0 0.0
        %496 = vmatpush.msra.mxu0 0.0
        %497 = vmatpush.msra.mxu0 0.0
        %498 = vmatpush.msra.mxu0 %v479
        %499 = vmatpush.msra.mxu0 %v465
        %500 = vmatmul.f32.gmra.mxu0 %v476
        %v501 = vpop.f32.mrf.mxu0
        %v502 = vadd.f32 %v472, %v501
        %503 = vdwg.mxu0
        %504 = vmatpush.msra.mxu0 0.0
        %505 = vmatpush.msra.mxu0 0.0
        %506 = vmatpush.msra.mxu0 0.0
        %507 = vmatpush.msra.mxu0 0.0
        %508 = vmatpush.msra.mxu0 0.0
        %509 = vmatpush.msra.mxu0 0.0
        %510 = vmatpush.msra.mxu0 0.0
        %511 = vmatpush.msra.mxu0 0.0
        %512 = vmatpush.msra.mxu0 0.0
        %513 = vmatpush.msra.mxu0 0.0
        %514 = vmatpush.msra.mxu0 0.0
        %515 = vmatpush.msra.mxu0 0.0
        %516 = vmatpush.msra.mxu0 0.0
        %517 = vmatpush.msra.mxu0 0.0
        %518 = vmatpush.msra.mxu0 %v482
        %519 = vmatpush.msra.mxu0 %v466
        %520 = vmatmul.f32.gmra.mxu0 %v476
        %v521 = vpop.f32.mrf.mxu0
        %v522 = vadd.f32 %v472, %v521
        %523 = vdwg.mxu0
        %v524 = vmax.f32 %v502, 0.0
        %v525 = vmax.f32 %v522, 0.0
        %527 = vrot.lane.b32.xlu0 %v525, 1
        %v528 = vpop.permute.xlu0 %527
        %531 = vrot.lane.b32.xlu0 %v524, 1
        %v532 = vpop.permute.xlu0 %531
        %vm533 = vcmask 7168
        %v534 = vsel %vm533, %v532, %v528
        %v537 = vsel %vm533, %v528, %v532
        %v538 = vperm.slane %v359, 2
        %v539 = vperm.slane %v359, 6
        %v542 = vperm.slane %v538, 2
        %v543 = vperm.slane %v539, 2
        %v544 = vmul.f32 %v537, %v542
        %v545 = vmul.f32 %v534, %v543
        %546 = vrot.lane.b32.xlu0 %v524, 127
        %v547 = vpop.permute.xlu0 %546
        %548 = vrot.lane.b32.xlu0 %v525, 127
        %v549 = vpop.permute.xlu0 %548
        %vm550 = vcmask 1039360
        %v551 = vsel %vm550, %v547, %v549
        %v555 = vsel %vm550, %v549, %v547
        %v556 = vperm.slane %v359, 3
        %v557 = vperm.slane %v359, 7
        %v560 = vperm.slane %v556, 3
        %v561 = vperm.slane %v557, 3
        %v562 = vmul.f32 %v551, %v560
        %v563 = vmul.f32 %v555, %v561
        %v564 = vrot.slane %v524, 4
        %v565 = vrot.slane %v525, 4
        %v568 = vsel %vm375, %v544, %v564
        %v569 = vsel %vm375, %v545, %v565
        %v570 = vld [vmem:[%s6] sm:$0xf]
        %v571 = vld [vmem:[%s7] sm:$0xf]
        %573 = vset.pattern.permute.xlu0 0
        %574 = vperm.xlu0 %573, %v571
        %v575 = vpop.permute.xlu0 %574
        %v578 = vsel %vm474, %v570, 0
        %v581 = vsel %vm375, %v562, 0
        %v584 = vsel %vm375, %v563, 0
        %586 = vmatpush.msra.mxu0 0.0
        %587 = vmatpush.msra.mxu0 0.0
        %588 = vmatpush.msra.mxu0 0.0
        %589 = vmatpush.msra.mxu0 0.0
        %590 = vmatpush.msra.mxu0 0.0
        %591 = vmatpush.msra.mxu0 0.0
        %592 = vmatpush.msra.mxu0 0.0
        %593 = vmatpush.msra.mxu0 0.0
        %594 = vmatpush.msra.mxu0 0.0
        %595 = vmatpush.msra.mxu0 0.0
        %596 = vmatpush.msra.mxu0 0.0
        %597 = vmatpush.msra.mxu0 0.0
        %598 = vmatpush.msra.mxu0 0.0
        %599 = vmatpush.msra.mxu0 0.0
        %600 = vmatpush.msra.mxu0 %v581
        %601 = vmatpush.msra.mxu0 %v568
        %602 = vmatmul.f32.gmra.mxu0 %v578
        %v603 = vpop.f32.mrf.mxu0
        %v604 = vadd.f32 %v575, %v603
        %605 = vdwg.mxu0
        %606 = vmatpush.msra.mxu0 0.0
        %607 = vmatpush.msra.mxu0 0.0
        %608 = vmatpush.msra.mxu0 0.0
        %609 = vmatpush.msra.mxu0 0.0
        %610 = vmatpush.msra.mxu0 0.0
        %611 = vmatpush.msra.mxu0 0.0
        %612 = vmatpush.msra.mxu0 0.0
        %613 = vmatpush.msra.mxu0 0.0
        %614 = vmatpush.msra.mxu0 0.0
        %615 = vmatpush.msra.mxu0 0.0
        %616 = vmatpush.msra.mxu0 0.0
        %617 = vmatpush.msra.mxu0 0.0
        %618 = vmatpush.msra.mxu0 0.0
        %619 = vmatpush.msra.mxu0 0.0
        %620 = vmatpush.msra.mxu0 %v584
        %621 = vmatpush.msra.mxu0 %v569
        %622 = vmatmul.f32.gmra.mxu0 %v578
        %v623 = vpop.f32.mrf.mxu0
        %v624 = vadd.f32 %v575, %v623
        %625 = vdwg.mxu0
        %v626 = vmax.f32 %v604, 0.0
        %v627 = vmax.f32 %v624, 0.0
        %v628 = vld [vmem:[%s8] sm:$0xff]
        %v629 = vld [vmem:[%s8 + $0x8] sm:$0xff]
        %v630 = vld [vmem:[%s9] sm:$0xff]
        %v631 = vld [vmem:[%s9 + $0x8] sm:$0xff]
        %633 = vset.pattern.permute.xlu0 0
        %634 = vperm.xlu0 %633, %v630
        %v635 = vpop.permute.xlu0 %634
        %638 = vset.pattern.permute.xlu0 0
        %639 = vperm.xlu0 %638, %v631
        %v640 = vpop.permute.xlu0 %639
        %v643 = vsel %vm371, %v628, 0
        %v646 = vsel %vm371, %v629, 0
        %v649 = vsel %vm375, %v626, 0
        %v652 = vsel %vm375, %v627, 0
        %654 = vmatpush.msra.mxu0 0.0
        %655 = vmatpush.msra.mxu0 0.0
        %656 = vmatpush.msra.mxu0 0.0
        %657 = vmatpush.msra.mxu0 0.0
        %658 = vmatpush.msra.mxu0 0.0
        %659 = vmatpush.msra.mxu0 0.0
        %660 = vmatpush.msra.mxu0 0.0
        %661 = vmatpush.msra.mxu0 0.0
        %662 = vmatpush.msra.mxu0 0.0
        %663 = vmatpush.msra.mxu0 0.0
        %664 = vmatpush.msra.mxu0 0.0
        %665 = vmatpush.msra.mxu0 0.0
        %666 = vmatpush.msra.mxu0 0.0
        %667 = vmatpush.msra.mxu0 0.0
        %668 = vmatpush.msra.mxu0 0.0
        %669 = vmatpush.msra.mxu0 %v649
        %670 = vmatmul.f32.gmra.mxu0 %v643
        %v671 = vpop.f32.mrf.mxu0
        %v672 = vadd.f32 %v635, %v671
        %673 = vmatmul.f32.gmra.mxu0 %v646
        %v674 = vpop.f32.mrf.mxu0
        %v675 = vadd.f32 %v640, %v674
        %676 = vdwg.mxu0
        %677 = vmatpush.msra.mxu0 0.0
        %678 = vmatpush.msra.mxu0 0.0
        %679 = vmatpush.msra.mxu0 0.0
        %680 = vmatpush.msra.mxu0 0.0
        %681 = vmatpush.msra.mxu0 0.0
        %682 = vmatpush.msra.mxu0 0.0
        %683 = vmatpush.msra.mxu0 0.0
        %684 = vmatpush.msra.mxu0 0.0
        %685 = vmatpush.msra.mxu0 0.0
        %686 = vmatpush.msra.mxu0 0.0
        %687 = vmatpush.msra.mxu0 0.0
        %688 = vmatpush.msra.mxu0 0.0
        %689 = vmatpush.msra.mxu0 0.0
        %690 = vmatpush.msra.mxu0 0.0
        %691 = vmatpush.msra.mxu0 0.0
        %692 = vmatpush.msra.mxu0 %v652
        %693 = vmatmul.f32.gmra.mxu0 %v643
        %v694 = vpop.f32.mrf.mxu0
        %v695 = vadd.f32 %v635, %v694
        %696 = vmatmul.f32.gmra.mxu0 %v646
        %v697 = vpop.f32.mrf.mxu0
        %v698 = vadd.f32 %v640, %v697
        %699 = vdwg.mxu0
        %700 = vst [vmem:[%s352] sm:$0xff] %v672
        %701 = vst [vmem:[%s352 + $0x8] sm:$0xff] %v695
        %702 = vst [vmem:[%s352 + $0x10] sm:$0xff] %v675
        %703 = vst [vmem:[%s352 + $0x18] sm:$0xff] %v698
        %s704 = sand.u32 %s247, 1
        %s705 = scalar_lea.sflag [#allocation3], %s704
        %s706 = sand.u32 %s247, 1
        %s707 = smul.addr %s706, 32
        %s708 = scalar_lea.vmem [#allocation2], %s707
        // Predicated region
        $region61: #{tpu_custom_call.1} parent=59 // pred_check
          %p709 = pneg %p257
        $region62: #{tpu_custom_call.1} parent=59 // pred_check_branch
          %711 = sbr.rel (%p709) target = $region64
        $region63: #{tpu_custom_call.1} parent=59 // pred_region
          %713 = vsyncadd %s705, 0
          %s714 = smul.addr %s24, 4
          %s715 = smul.addr %s714, 8
          %s716 = scalar_lea.hbm %s10, %s715
          %s717 = sshll.u32 %s708, 4
          %s718 = int_to_ptr.vmem [resolvable:$true] %s717
          %s719 = sshll.u32 %s716, 4
          %s720 = int_to_ptr.hbm [resolvable:$true] %s719
          %725 = dma.vmem_to_hbm [thread:$0]  %s718, 512, %s720, %s705, 256, 256, 16
        $region64: #{tpu_custom_call.1} parent=59 // pred_fallthru
          _
      $region60: #{tpu_custom_call.1} parent=5 // pred_fallthru
        _
      %p726 = scmp.le.s32.totalorder 2, %s19
      // Predicated region
      $region65: #{tpu_custom_call.1} parent=5 // pred_check
        %p727 = pneg %p726
      $region66: #{tpu_custom_call.1} parent=5 // pred_check_branch
        %729 = sbr.rel (%p727) target = $region68
      $region67: #{tpu_custom_call.1} parent=5 // pred_region
        %s730 = ssub.s32 %s19, 2
        // Predicated region
        $region69: #{tpu_custom_call.1} parent=67 // pred_check
          %p731 = pneg %p263
        $region70: #{tpu_custom_call.1} parent=67 // pred_check_branch
          %733 = sbr.rel (%p731) target = $region72
        $region71: #{tpu_custom_call.1} parent=67 // pred_region
          %s734 = sand.u32 %s248, 1
          %s735 = scalar_lea.sflag [#allocation3], %s734
          %s736 = sand.u32 %s248, 1
          %s737 = smul.addr %s736, 32
          %s738 = scalar_lea.vmem [#allocation2], %s737
          %740 = dma.done %s735, 512
        $region72: #{tpu_custom_call.1} parent=67 // pred_fallthru
          _
      $region68: #{tpu_custom_call.1} parent=5 // pred_fallthru
        _
    $region6: #{tpu_custom_call.1} parent=1 // loop_footer
      %s23 = sadd.s32 1, %s19
    $region7: #{tpu_custom_call.1} parent=1 // loop_footer_branch
      %18 = sbr.rel target = $region3
    $region8: #{tpu_custom_call.1} parent=1 // loop_exit
      _
    %741 = vsyncpa [#allocation3], 1
    %s742 = scalar_lea.sflag [#allocation3], 1
    %743 = vsyncpa %s742, 1

</llo_original>
